<compile_context>
chip_gen: v5e
topology: v5e:2x2
jax: 0.10.0
libtpu: 0.0.40
codegen_flags: <defaults>
</compile_context>

<pallas_src>
import functools

import jax
import jax.numpy as jnp
from jax.experimental import pallas as pl
from jax.experimental.pallas import tpu as pltpu


def _inverted_residual_kernel(x_ref, *refs, identity, expand):
    if expand:
        w1t_ref, b1_ref, d2_ref, b2_ref, w3t_ref, b3_ref, o_ref = refs
    else:
        d2_ref, b2_ref, w3t_ref, b3_ref, o_ref = refs

    x_f32 = x_ref[0]                                       # (Cin, TPIX) f32

    if expand:
        # expand 1x1 conv (BN1 scale folded into w1t) + bias + ReLU6
        h = jnp.dot(w1t_ref[...], x_f32.astype(jnp.bfloat16),
                    preferred_element_type=jnp.float32)    # (hid, TPIX) f32
        h = h + b1_ref[...]                                # (hid, 1) lane-broadcast
        h = jnp.clip(h, 0.0, 6.0)
    else:
        h = x_f32                                          # hid == Cin in this branch

    # depthwise 1x1 conv + BN2 collapsed into per-channel scale/bias + ReLU6
    h = h * d2_ref[...] + b2_ref[...]
    h = jnp.clip(h, 0.0, 6.0)

    # project 1x1 conv (BN3 scale folded into w3t) + bias
    y = jnp.dot(w3t_ref[...], h.astype(jnp.bfloat16),
                preferred_element_type=jnp.float32)        # (Cout, TPIX) f32
    y = y + b3_ref[...]

    if identity:
        y = y + x_f32

    o_ref[0] = y.astype(o_ref.dtype)


def inverted_residual_forward(x_nchw, params, *, stride):
    """x_nchw: (N, Cin, H, W) float32.  params: dict of BN-folded weights."""
    N, Cin, H, W = x_nchw.shape
    expand = "w1t" in params
    hid = params["d2"].shape[0]
    Cout = params["w3t"].shape[0]
    identity = (stride == 1) and (Cin == Cout)

    # NCHW -> (N, C, H*W): free reshape, stays channel-major (no transposes).
    HW = H * W
    x3d = x_nchw.reshape(N, Cin, HW)

    # Lane-dense pixel tile: multiple of 128, target 1024, pad the pixel axis if needed.
    TPIX = min(1024, pl.cdiv(HW, 128) * 128)
    HW_pad = pl.cdiv(HW, TPIX) * TPIX
    if HW_pad != HW:
        x3d = jnp.pad(x3d, ((0, 0), (0, 0), (0, HW_pad - HW)))

    grid = (N, HW_pad // TPIX)
    full = lambda n, p: (0, 0)   # weights / biases fully resident every step

    weight_args, weight_specs = [], []
    if expand:
        weight_args += [params["w1t"], params["b1"]]
        weight_specs += [pl.BlockSpec((hid, Cin), full),   # w1t (bf16)
                         pl.BlockSpec((hid, 1), full)]     # b1
    weight_args += [params["d2"], params["b2"], params["w3t"], params["b3"]]
    weight_specs += [pl.BlockSpec((hid, 1), full),         # d2 = w2*s2
                     pl.BlockSpec((hid, 1), full),         # b2
                     pl.BlockSpec((Cout, hid), full),      # w3t (bf16)
                     pl.BlockSpec((Cout, 1), full)]        # b3

    out3d = pl.pallas_call(
        functools.partial(_inverted_residual_kernel, identity=identity, expand=expand),
        out_shape=jax.ShapeDtypeStruct((N, Cout, HW_pad), x_nchw.dtype),
        grid_spec=pltpu.PrefetchScalarGridSpec(
            num_scalar_prefetch=0,
            grid=grid,
            in_specs=[pl.BlockSpec((1, Cin, TPIX), lambda n, p: (n, 0, p))] + weight_specs,
            out_specs=pl.BlockSpec((1, Cout, TPIX), lambda n, p: (n, 0, p)),
        ),
        compiler_params=pltpu.CompilerParams(
            dimension_semantics=("parallel", "parallel"),
            vmem_limit_bytes=32 * 1024 * 1024),
    )(x3d, *weight_args)

    if HW_pad != HW:
        out3d = out3d[:, :, :HW]
    return out3d.reshape(N, Cout, H, W)


def _fold_bn(gamma, beta, mean, var, eps=1e-5):
    scale = gamma / jnp.sqrt(var + eps)
    bias = beta - mean * scale
    return scale, bias


def make_params(key, inp, oup, expand_ratio):
    """Build BN-folded, channel-major weights matching the PyTorch module layout."""
    hid = int(round(inp * expand_ratio))
    ks = jax.random.split(key, 16)
    params = {}

    if expand_ratio != 1:
        # Conv2d(inp, hid, 1) weight (hid,inp,1,1) -> (inp,hid) here, then transposed.
        w1 = jax.random.normal(ks[0], (inp, hid), jnp.float32) * 0.2
        g1 = jax.random.uniform(ks[3], (hid,), jnp.float32, 0.5, 1.5)
        be1 = jax.random.normal(ks[4], (hid,), jnp.float32) * 0.1
        m1 = jax.random.normal(ks[5], (hid,), jnp.float32) * 0.1
        v1 = jax.random.uniform(ks[6], (hid,), jnp.float32, 0.5, 1.5)
        s1, b1 = _fold_bn(g1, be1, m1, v1)
        params["w1t"] = (w1 * s1[None, :]).T.astype(jnp.bfloat16)   # (hid, inp)
        params["b1"] = b1[:, None]                                  # (hid, 1)

    # Depthwise Conv2d(hid, hid, 1, groups=hid) weight (hid,1,1,1) + BN2.
    w2 = jax.random.normal(ks[1], (hid,), jnp.float32) * 0.5 + 1.0
    g2 = jax.random.uniform(ks[7], (hid,), jnp.float32, 0.5, 1.5)
    be2 = jax.random.normal(ks[8], (hid,), jnp.float32) * 0.1
    m2 = jax.random.normal(ks[9], (hid,), jnp.float32) * 0.1
    v2 = jax.random.uniform(ks[10], (hid,), jnp.float32, 0.5, 1.5)
    s2, b2 = _fold_bn(g2, be2, m2, v2)
    params["d2"] = (w2 * s2)[:, None].astype(jnp.float32)           # (hid, 1)
    params["b2"] = b2[:, None]                                      # (hid, 1)

    # Conv2d(hid, oup, 1) weight (oup,hid,1,1) -> (hid,oup) here, then transposed.
    w3 = jax.random.normal(ks[2], (hid, oup), jnp.float32) * 0.2
    g3 = jax.random.uniform(ks[11], (oup,), jnp.float32, 0.5, 1.5)
    be3 = jax.random.normal(ks[12], (oup,), jnp.float32) * 0.1
    m3 = jax.random.normal(ks[13], (oup,), jnp.float32) * 0.1
    v3 = jax.random.uniform(ks[14], (oup,), jnp.float32, 0.5, 1.5)
    s3, b3 = _fold_bn(g3, be3, m3, v3)
    params["w3t"] = (w3 * s3[None, :]).T.astype(jnp.bfloat16)       # (oup, hid)
    params["b3"] = b3[:, None]                                      # (oup, 1)
    return params


def reference_forward(x_nchw, params, *, stride):
    """Pure-JAX reference using the same folded weights and the same bf16 operand
    rounding as the kernel (f32 accumulation), so it isolates the Pallas plumbing."""
    N, Cin, H, W = x_nchw.shape
    x = x_nchw.reshape(N, Cin, H * W).astype(jnp.float32)
    expand = "w1t" in params
    if expand:
        w1t = params["w1t"].astype(jnp.float32)
        xb = x.astype(jnp.bfloat16).astype(jnp.float32)
        h = jnp.einsum("hc,ncp->nhp", w1t, xb) + params["b1"][None]
        h = jnp.clip(h, 0.0, 6.0)
    else:
        h = x
    h = h * params["d2"][None] + params["b2"][None]
    h = jnp.clip(h, 0.0, 6.0)
    w3t = params["w3t"].astype(jnp.float32)
    hb = h.astype(jnp.bfloat16).astype(jnp.float32)
    y = jnp.einsum("oh,nhp->nop", w3t, hb) + params["b3"][None]
    Cout = w3t.shape[0]
    if stride == 1 and Cin == Cout:
        y = y + x
    return y.reshape(N, Cout, H, W)


if __name__ == "__main__":
    key = jax.random.PRNGKey(0)
    k_x1, k_p1, k_x2, k_p2 = jax.random.split(key, 4)

    # Case 1: inp=oup=4, stride=1, expand_ratio=6 -> hidden_dim=24, identity residual active.
    x1 = jax.random.normal(k_x1, (2, 4, 16, 16), jnp.float32)   # NCHW
    p1 = make_params(k_p1, 4, 4, 6)
    out1 = jax.block_until_ready(inverted_residual_forward(x1, p1, stride=1))
    ref1 = reference_forward(x1, p1, stride=1)
    assert out1.shape == (2, 4, 16, 16)
    assert jnp.allclose(out1, ref1, atol=1e-3, rtol=1e-3), float(jnp.max(jnp.abs(out1 - ref1)))

    # Case 2: expand_ratio=1 branch (dw -> BN -> ReLU6 -> 1x1 -> BN), stride=2 -> no residual.
    x2 = jax.random.normal(k_x2, (2, 8, 16, 16), jnp.float32)
    p2 = make_params(k_p2, 8, 8, 1)
    out2 = jax.block_until_ready(inverted_residual_forward(x2, p2, stride=2))
    ref2 = reference_forward(x2, p2, stride=2)
    assert out2.shape == (2, 8, 16, 16)
    assert jnp.allclose(out2, ref2, atol=1e-3, rtol=1e-3), float(jnp.max(jnp.abs(out2 - ref2)))

    print("KERNEL_OK")
</pallas_src>

<mosaic_0001>
module attributes {stable_mosaic.version = 11 : i64} {
  func.func @_inverted_residual_kernel(%arg0: i32, %arg1: i32, %arg2: memref<1x4x256xf32, #tpu.memory_space<vmem>>, %arg3: memref<24x4xbf16, #tpu.memory_space<vmem>>, %arg4: memref<24x1xf32, #tpu.memory_space<vmem>>, %arg5: memref<24x1xf32, #tpu.memory_space<vmem>>, %arg6: memref<24x1xf32, #tpu.memory_space<vmem>>, %arg7: memref<4x24xbf16, #tpu.memory_space<vmem>>, %arg8: memref<4x1xf32, #tpu.memory_space<vmem>>, %arg9: memref<1x4x256xf32, #tpu.memory_space<vmem>>) attributes {dimension_semantics = [#tpu.dimension_semantics<parallel>, #tpu.dimension_semantics<parallel>], iteration_bounds = array<i64: 2, 1>, scalar_prefetch = 0 : i64, scratch_operands = 0 : i64, tpu.core_type = #tpu.core_type<tc>, window_params = [{transform_indices = @transform_0, window_bounds = array<i64: 1, 4, 256>}, {pipeline_mode = #tpu.pipeline_mode<synchronous>, transform_indices = @transform_1, window_bounds = array<i64: 24, 4>}, {pipeline_mode = #tpu.pipeline_mode<synchronous>, transform_indices = @transform_2, window_bounds = array<i64: 24, 1>}, {pipeline_mode = #tpu.pipeline_mode<synchronous>, transform_indices = @transform_3, window_bounds = array<i64: 24, 1>}, {pipeline_mode = #tpu.pipeline_mode<synchronous>, transform_indices = @transform_4, window_bounds = array<i64: 24, 1>}, {pipeline_mode = #tpu.pipeline_mode<synchronous>, transform_indices = @transform_5, window_bounds = array<i64: 4, 24>}, {pipeline_mode = #tpu.pipeline_mode<synchronous>, transform_indices = @transform_6, window_bounds = array<i64: 4, 1>}, {transform_indices = @transform_7, window_bounds = array<i64: 1, 4, 256>}]} {
    %c0 = arith.constant 0 : index
    %c0_0 = arith.constant 0 : index
    %c0_1 = arith.constant 0 : index
    %0 = vector.load %arg2[%c0, %c0_0, %c0_1] : memref<1x4x256xf32, #tpu.memory_space<vmem>>, vector<1x4x256xf32>
    %1 = vector.shape_cast %0 : vector<1x4x256xf32> to vector<4x256xf32>
    %c0_2 = arith.constant 0 : index
    %c0_3 = arith.constant 0 : index
    %2 = vector.load %arg3[%c0_2, %c0_3] : memref<24x4xbf16, #tpu.memory_space<vmem>>, vector<24x4xbf16>
    %3 = arith.truncf %1 : vector<4x256xf32> to vector<4x256xbf16>
    %cst = arith.constant dense<0.000000e+00> : vector<24x256xf32>
    %4 = tpu.matmul %2, %3, %cst {dimension_numbers = #tpu.dot_dimension_numbers<[1], [0], [0], [1], [0, 0, 1, 1], [], []>} : vector<24x4xbf16>, vector<4x256xbf16>, vector<24x256xf32> -> vector<24x256xf32>
    %c0_4 = arith.constant 0 : index
    %c0_5 = arith.constant 0 : index
    %5 = vector.load %arg4[%c0_4, %c0_5] : memref<24x1xf32, #tpu.memory_space<vmem>>, vector<24x1xf32>
    %6 = vector.broadcast %5 : vector<24x1xf32> to vector<24x256xf32>
    %7 = arith.addf %4, %6 : vector<24x256xf32>
    %cst_6 = arith.constant 0.000000e+00 : f32
    %cst_7 = arith.constant 6.000000e+00 : f32
    %8 = vector.broadcast %cst_6 : f32 to vector<24x256xf32>
    %9 = arith.maximumf %8, %7 : vector<24x256xf32>
    %10 = vector.broadcast %cst_7 : f32 to vector<24x256xf32>
    %11 = arith.minimumf %10, %9 : vector<24x256xf32>
    %c0_8 = arith.constant 0 : index
    %c0_9 = arith.constant 0 : index
    %12 = vector.load %arg5[%c0_8, %c0_9] : memref<24x1xf32, #tpu.memory_space<vmem>>, vector<24x1xf32>
    %13 = vector.broadcast %12 : vector<24x1xf32> to vector<24x256xf32>
    %14 = arith.mulf %11, %13 : vector<24x256xf32>
    %c0_10 = arith.constant 0 : index
    %c0_11 = arith.constant 0 : index
    %15 = vector.load %arg6[%c0_10, %c0_11] : memref<24x1xf32, #tpu.memory_space<vmem>>, vector<24x1xf32>
    %16 = vector.broadcast %15 : vector<24x1xf32> to vector<24x256xf32>
    %17 = arith.addf %14, %16 : vector<24x256xf32>
    %cst_12 = arith.constant 0.000000e+00 : f32
    %cst_13 = arith.constant 6.000000e+00 : f32
    %18 = vector.broadcast %cst_12 : f32 to vector<24x256xf32>
    %19 = arith.maximumf %18, %17 : vector<24x256xf32>
    %20 = vector.broadcast %cst_13 : f32 to vector<24x256xf32>
    %21 = arith.minimumf %20, %19 : vector<24x256xf32>
    %c0_14 = arith.constant 0 : index
    %c0_15 = arith.constant 0 : index
    %22 = vector.load %arg7[%c0_14, %c0_15] : memref<4x24xbf16, #tpu.memory_space<vmem>>, vector<4x24xbf16>
    %23 = arith.truncf %21 : vector<24x256xf32> to vector<24x256xbf16>
    %cst_16 = arith.constant dense<0.000000e+00> : vector<4x256xf32>
    %24 = tpu.matmul %22, %23, %cst_16 {dimension_numbers = #tpu.dot_dimension_numbers<[1], [0], [0], [1], [0, 0, 1, 1], [], []>} : vector<4x24xbf16>, vector<24x256xbf16>, vector<4x256xf32> -> vector<4x256xf32>
    %c0_17 = arith.constant 0 : index
    %c0_18 = arith.constant 0 : index
    %25 = vector.load %arg8[%c0_17, %c0_18] : memref<4x1xf32, #tpu.memory_space<vmem>>, vector<4x1xf32>
    %26 = vector.broadcast %25 : vector<4x1xf32> to vector<4x256xf32>
    %27 = arith.addf %24, %26 : vector<4x256xf32>
    %28 = arith.addf %27, %1 : vector<4x256xf32>
    %c0_19 = arith.constant 0 : index
    %c0_20 = arith.constant 0 : index
    %c0_21 = arith.constant 0 : index
    %29 = vector.load %arg9[%c0_19, %c0_20, %c0_21] : memref<1x4x256xf32, #tpu.memory_space<vmem>>, vector<1x4x256xf32>
    %30 = vector.shape_cast %29 : vector<1x4x256xf32> to vector<4x256xf32>
    %31 = vector.shape_cast %28 : vector<4x256xf32> to vector<1x4x256xf32>
    tpu.vector_store %arg9[%c0_19, %c0_20, %c0_21], %31 {strides = array<i32>} : memref<1x4x256xf32, #tpu.memory_space<vmem>>, vector<1x4x256xf32>,
    return
  }
  func.func @transform_0(%arg0: i32, %arg1: i32) -> (i32, i32, i32) {
    %c0_i32 = arith.constant 0 : i32
    %c0_i32_0 = arith.constant 0 : i32
    return %arg0, %c0_i32, %arg1 : i32, i32, i32
  }
  func.func @transform_1(%arg0: i32, %arg1: i32) -> (i32, i32) {
    %c0_i32 = arith.constant 0 : i32
    %c0_i32_0 = arith.constant 0 : i32
    %c0_i32_1 = arith.constant 0 : i32
    return %c0_i32, %c0_i32_0 : i32, i32
  }
  func.func @transform_2(%arg0: i32, %arg1: i32) -> (i32, i32) {
    %c0_i32 = arith.constant 0 : i32
    %c0_i32_0 = arith.constant 0 : i32
    %c0_i32_1 = arith.constant 0 : i32
    return %c0_i32, %c0_i32_0 : i32, i32
  }
  func.func @transform_3(%arg0: i32, %arg1: i32) -> (i32, i32) {
    %c0_i32 = arith.constant 0 : i32
    %c0_i32_0 = arith.constant 0 : i32
    %c0_i32_1 = arith.constant 0 : i32
    return %c0_i32, %c0_i32_0 : i32, i32
  }
  func.func @transform_4(%arg0: i32, %arg1: i32) -> (i32, i32) {
    %c0_i32 = arith.constant 0 : i32
    %c0_i32_0 = arith.constant 0 : i32
    %c0_i32_1 = arith.constant 0 : i32
    return %c0_i32, %c0_i32_0 : i32, i32
  }
  func.func @transform_5(%arg0: i32, %arg1: i32) -> (i32, i32) {
    %c0_i32 = arith.constant 0 : i32
    %c0_i32_0 = arith.constant 0 : i32
    %c0_i32_1 = arith.constant 0 : i32
    return %c0_i32, %c0_i32_0 : i32, i32
  }
  func.func @transform_6(%arg0: i32, %arg1: i32) -> (i32, i32) {
    %c0_i32 = arith.constant 0 : i32
    %c0_i32_0 = arith.constant 0 : i32
    %c0_i32_1 = arith.constant 0 : i32
    return %c0_i32, %c0_i32_0 : i32, i32
  }
  func.func @transform_7(%arg0: i32, %arg1: i32) -> (i32, i32, i32) {
    %c0_i32 = arith.constant 0 : i32
    %c0_i32_0 = arith.constant 0 : i32
    return %arg0, %c0_i32, %arg1 : i32, i32, i32
  }
}

</mosaic_0001>

<llo_original>
// kernel: tpu_custom_call.1
$region0: #{tpu_custom_call.1}
  #allocation0 [shape = 'u32[]', space=smem, size = 0x4, offset = 0x4, fixed_abs, tag = 'smem constant byte address 0x4 - core index']
  #allocation1 [shape = 'u32[72,128]{1,0:T(1,128)}', space=vmem, size = 0x9000, scoped, tag = 'internal scratch']
  %s0 = inlined_call_operand.vmem [shape: f32[2,4,256], index: 0, kind: input, shape index: {}]
  %s1 = inlined_call_operand.vmem [shape: bf16[24,4], index: 1, kind: input, shape index: {}]
  %s2 = inlined_call_operand.vmem [shape: f32[24,1], index: 2, kind: input, shape index: {}]
  %s3 = inlined_call_operand.vmem [shape: f32[24,1], index: 3, kind: input, shape index: {}]
  %s4 = inlined_call_operand.vmem [shape: f32[24,1], index: 4, kind: input, shape index: {}]
  %s5 = inlined_call_operand.vmem [shape: bf16[4,24], index: 5, kind: input, shape index: {}]
  %s6 = inlined_call_operand.vmem [shape: f32[4,1], index: 6, kind: input, shape index: {}]
  %s7 = inlined_call_operand.hbm [shape: f32[2,4,256], index: 7, kind: output, shape index: {}]
  %s8 = sld [smem:[#allocation0]]
  $region61: #{tpu_custom_call.1} parent=0
    _
  %s10 = ssub.s32 1, %s8
  %s11 = scalar_select 0, %s10, %s8
  $region1: #{tpu_custom_call.1} parent=0
    #allocation2 [shape = 'u8[8192]{0}', space=vmem, size = 0x2000, scoped, tag = 'output window, operand 0']
    #allocation3 [shape = 's32[2]{0}', space=sflag, size = 0x8, scoped, tag = 'scoped memory for tpu_custom_call.1']
    %12 = vsyncpa [#allocation3], 0
    %s13 = scalar_lea.sflag [#allocation3], 1
    %14 = vsyncpa %s13, 0
    loop: start=0, step=1, limit=4
    $region2: #{tpu_custom_call.1} parent=1 // loop_pre_header
      _
    $region3: #{tpu_custom_call.1} parent=1 // loop_header
      %s16 = sphi 0, %s20
      %p17 = scmp.ge.s32.totalorder %s16, 4
      %s23 = sphi 0, %s35
      %s24 = sphi 0, %s31
      %s25 = sphi 0, %s23
      %s26 = sphi 0, %s24
      %s27 = sphi 0, %s25
      %s28 = sphi 0, %s26
      %s40 = sphi 0, %s42
      %s43 = sphi 0, %s40
      %s44 = sphi 0, %s43
      %s60 = sphi 0, %s44
      %s64 = sphi 0, %s64
      %s66 = sphi 0, %s64
      %s67 = sphi 0, %s66
      %s81 = sphi 0, %s67
      %s85 = sphi 0, %s85
      %s87 = sphi 0, %s85
      %s88 = sphi 0, %s87
      %s102 = sphi 0, %s88
      %s106 = sphi 0, %s106
      %s108 = sphi 0, %s106
      %s109 = sphi 0, %s108
      %s123 = sphi 0, %s109
      %s127 = sphi 0, %s127
      %s129 = sphi 0, %s127
      %s130 = sphi 0, %s129
      %s144 = sphi 0, %s130
      %s148 = sphi 0, %s148
      %s150 = sphi 0, %s148
      %s151 = sphi 0, %s150
      %s165 = sphi 0, %s151
      %s169 = sphi 0, %s169
      %s171 = sphi 0, %s169
      %s172 = sphi 0, %s171
      %s186 = sphi 0, %s172
      %s194 = sphi 0, %s196
      %s197 = sphi 0, %s194
      %s198 = sphi 0, %s197
      %s214 = sphi 0, %s198
    $region4: #{tpu_custom_call.1} parent=1 // loop_header_branch
      %19 = sbr.rel (%p17) target = $region8
    $region5: #{tpu_custom_call.1} parent=1 // loop_body
      %s21 = ssub.s32 %s16, 1
      %s22 = ssub.s32 %s16, 2
      %s29 = sadd.s32 1, %s24
      %p30 = scmp.ge.s32.totalorder %s29, 1
      %s31 = scalar_select %p30, 0, %s29
      %s32 = sadd.s32 1, %s23
      %s33 = scalar_select %p30, %s32, %s23
      %p34 = scmp.ge.s32.totalorder %s33, 2
      %s35 = scalar_select %p34, 0, %s33
      %s36 = ssub.s32 %s23, %s35
      %s37 = ssub.s32 %s24, %s31
      %s38 = sor.u32 %s36, %s37
      %p39 = scmp.eq.s32.totalorder %s38, 0
      %s41 = sadd.s32 %s40, 1
      %s42 = scalar_select %p39, %s40, %s41
      %p45 = pneg %p39
      %p46 = scmp.eq.s32.totalorder %s16, 1
      %p47 = por %p45, %p46
      %p48 = scmp.ne.s32.totalorder %s40, %s43
      %p49 = scmp.eq.s32.totalorder %s16, 0
      %p50 = por %p48, %p49
      %p51 = scmp.ne.s32.totalorder %s40, %s43
      %p52 = scmp.eq.s32.totalorder %s21, 1
      %p53 = por %p51, %p52
      %p54 = scmp.ne.s32.totalorder %s43, %s44
      %p55 = scmp.eq.s32.totalorder %s21, 0
      %p56 = por %p54, %p55
      %p57 = scmp.ne.s32.totalorder %s43, %s44
      %p58 = scmp.eq.s32.totalorder %s22, 1
      %p59 = por %p57, %p58
      %p61 = scmp.ne.s32.totalorder %s44, %s60
      %p62 = scmp.eq.s32.totalorder %s22, 0
      %p63 = por %p61, %p62
      %s65 = sadd.s32 %s64, 1
      %p68 = scmp.eq.s32.totalorder %s16, 1
      %p69 = scmp.ne.s32.totalorder %s64, %s66
      %p70 = scmp.eq.s32.totalorder %s16, 0
      %p71 = por %p69, %p70
      %p72 = scmp.ne.s32.totalorder %s64, %s66
      %p73 = scmp.eq.s32.totalorder %s21, 1
      %p74 = por %p72, %p73
      %p75 = scmp.ne.s32.totalorder %s66, %s67
      %p76 = scmp.eq.s32.totalorder %s21, 0
      %p77 = por %p75, %p76
      %p78 = scmp.ne.s32.totalorder %s66, %s67
      %p79 = scmp.eq.s32.totalorder %s22, 1
      %p80 = por %p78, %p79
      %p82 = scmp.ne.s32.totalorder %s67, %s81
      %p83 = scmp.eq.s32.totalorder %s22, 0
      %p84 = por %p82, %p83
      %s86 = sadd.s32 %s85, 1
      %p89 = scmp.eq.s32.totalorder %s16, 1
      %p90 = scmp.ne.s32.totalorder %s85, %s87
      %p91 = scmp.eq.s32.totalorder %s16, 0
      %p92 = por %p90, %p91
      %p93 = scmp.ne.s32.totalorder %s85, %s87
      %p94 = scmp.eq.s32.totalorder %s21, 1
      %p95 = por %p93, %p94
      %p96 = scmp.ne.s32.totalorder %s87, %s88
      %p97 = scmp.eq.s32.totalorder %s21, 0
      %p98 = por %p96, %p97
      %p99 = scmp.ne.s32.totalorder %s87, %s88
      %p100 = scmp.eq.s32.totalorder %s22, 1
      %p101 = por %p99, %p100
      %p103 = scmp.ne.s32.totalorder %s88, %s102
      %p104 = scmp.eq.s32.totalorder %s22, 0
      %p105 = por %p103, %p104
      %s107 = sadd.s32 %s106, 1
      %p110 = scmp.eq.s32.totalorder %s16, 1
      %p111 = scmp.ne.s32.totalorder %s106, %s108
      %p112 = scmp.eq.s32.totalorder %s16, 0
      %p113 = por %p111, %p112
      %p114 = scmp.ne.s32.totalorder %s106, %s108
      %p115 = scmp.eq.s32.totalorder %s21, 1
      %p116 = por %p114, %p115
      %p117 = scmp.ne.s32.totalorder %s108, %s109
      %p118 = scmp.eq.s32.totalorder %s21, 0
      %p119 = por %p117, %p118
      %p120 = scmp.ne.s32.totalorder %s108, %s109
      %p121 = scmp.eq.s32.totalorder %s22, 1
      %p122 = por %p120, %p121
      %p124 = scmp.ne.s32.totalorder %s109, %s123
      %p125 = scmp.eq.s32.totalorder %s22, 0
      %p126 = por %p124, %p125
      %s128 = sadd.s32 %s127, 1
      %p131 = scmp.eq.s32.totalorder %s16, 1
      %p132 = scmp.ne.s32.totalorder %s127, %s129
      %p133 = scmp.eq.s32.totalorder %s16, 0
      %p134 = por %p132, %p133
      %p135 = scmp.ne.s32.totalorder %s127, %s129
      %p136 = scmp.eq.s32.totalorder %s21, 1
      %p137 = por %p135, %p136
      %p138 = scmp.ne.s32.totalorder %s129, %s130
      %p139 = scmp.eq.s32.totalorder %s21, 0
      %p140 = por %p138, %p139
      %p141 = scmp.ne.s32.totalorder %s129, %s130
      %p142 = scmp.eq.s32.totalorder %s22, 1
      %p143 = por %p141, %p142
      %p145 = scmp.ne.s32.totalorder %s130, %s144
      %p146 = scmp.eq.s32.totalorder %s22, 0
      %p147 = por %p145, %p146
      %s149 = sadd.s32 %s148, 1
      %p152 = scmp.eq.s32.totalorder %s16, 1
      %p153 = scmp.ne.s32.totalorder %s148, %s150
      %p154 = scmp.eq.s32.totalorder %s16, 0
      %p155 = por %p153, %p154
      %p156 = scmp.ne.s32.totalorder %s148, %s150
      %p157 = scmp.eq.s32.totalorder %s21, 1
      %p158 = por %p156, %p157
      %p159 = scmp.ne.s32.totalorder %s150, %s151
      %p160 = scmp.eq.s32.totalorder %s21, 0
      %p161 = por %p159, %p160
      %p162 = scmp.ne.s32.totalorder %s150, %s151
      %p163 = scmp.eq.s32.totalorder %s22, 1
      %p164 = por %p162, %p163
      %p166 = scmp.ne.s32.totalorder %s151, %s165
      %p167 = scmp.eq.s32.totalorder %s22, 0
      %p168 = por %p166, %p167
      %s170 = sadd.s32 %s169, 1
      %p173 = scmp.eq.s32.totalorder %s16, 1
      %p174 = scmp.ne.s32.totalorder %s169, %s171
      %p175 = scmp.eq.s32.totalorder %s16, 0
      %p176 = por %p174, %p175
      %p177 = scmp.ne.s32.totalorder %s169, %s171
      %p178 = scmp.eq.s32.totalorder %s21, 1
      %p179 = por %p177, %p178
      %p180 = scmp.ne.s32.totalorder %s171, %s172
      %p181 = scmp.eq.s32.totalorder %s21, 0
      %p182 = por %p180, %p181
      %p183 = scmp.ne.s32.totalorder %s171, %s172
      %p184 = scmp.eq.s32.totalorder %s22, 1
      %p185 = por %p183, %p184
      %p187 = scmp.ne.s32.totalorder %s172, %s186
      %p188 = scmp.eq.s32.totalorder %s22, 0
      %p189 = por %p187, %p188
      %s190 = ssub.s32 %s23, %s35
      %s191 = ssub.s32 %s24, %s31
      %s192 = sor.u32 %s190, %s191
      %p193 = scmp.eq.s32.totalorder %s192, 0
      %s195 = sadd.s32 %s194, 1
      %s196 = scalar_select %p193, %s194, %s195
      %p199 = pneg %p193
      %p200 = scmp.eq.s32.totalorder %s16, 1
      %p201 = por %p199, %p200
      %p202 = scmp.ne.s32.totalorder %s194, %s197
      %p203 = scmp.eq.s32.totalorder %s16, 0
      %p204 = por %p202, %p203
      %p205 = scmp.ne.s32.totalorder %s194, %s197
      %p206 = scmp.eq.s32.totalorder %s21, 1
      %p207 = por %p205, %p206
      %p208 = scmp.ne.s32.totalorder %s197, %s198
      %p209 = scmp.eq.s32.totalorder %s21, 0
      %p210 = por %p208, %p209
      %p211 = scmp.ne.s32.totalorder %s197, %s198
      %p212 = scmp.eq.s32.totalorder %s22, 1
      %p213 = por %p211, %p212
      %p215 = scmp.ne.s32.totalorder %s198, %s214
      %p216 = scmp.eq.s32.totalorder %s22, 0
      %p217 = por %p215, %p216
      %p218 = scmp.le.s32.totalorder 1, %s16
      %p219 = scmp.lt.s32.totalorder %s16, 3
      %p220 = pnand %p218, %p219
      %p221 = pneg %p220
      // Predicated region
      $region9: #{tpu_custom_call.1} parent=5 // pred_check
        _
      $region10: #{tpu_custom_call.1} parent=5 // pred_check_branch
        %223 = sbr.rel (%p220) target = $region12
      $region11: #{tpu_custom_call.1} parent=5 // pred_region
        %s224 = ssub.s32 %s16, 1
        // Predicated region
        $region13: #{tpu_custom_call.1} parent=11 // pred_check
          %p225 = pneg %p77
        $region14: #{tpu_custom_call.1} parent=11 // pred_check_branch
          %227 = sbr.rel (%p225) target = $region16
        $region15: #{tpu_custom_call.1} parent=11 // pred_region
          _
        $region16: #{tpu_custom_call.1} parent=11 // pred_fallthru
          _
        // Predicated region
        $region17: #{tpu_custom_call.1} parent=11 // pred_check
          %p228 = pneg %p98
        $region18: #{tpu_custom_call.1} parent=11 // pred_check_branch
          %230 = sbr.rel (%p228) target = $region20
        $region19: #{tpu_custom_call.1} parent=11 // pred_region
          _
        $region20: #{tpu_custom_call.1} parent=11 // pred_fallthru
          _
        // Predicated region
        $region21: #{tpu_custom_call.1} parent=11 // pred_check
          %p231 = pneg %p119
        $region22: #{tpu_custom_call.1} parent=11 // pred_check_branch
          %233 = sbr.rel (%p231) target = $region24
        $region23: #{tpu_custom_call.1} parent=11 // pred_region
          _
        $region24: #{tpu_custom_call.1} parent=11 // pred_fallthru
          _
        // Predicated region
        $region25: #{tpu_custom_call.1} parent=11 // pred_check
          %p234 = pneg %p140
        $region26: #{tpu_custom_call.1} parent=11 // pred_check_branch
          %236 = sbr.rel (%p234) target = $region28
        $region27: #{tpu_custom_call.1} parent=11 // pred_region
          _
        $region28: #{tpu_custom_call.1} parent=11 // pred_fallthru
          _
        // Predicated region
        $region29: #{tpu_custom_call.1} parent=11 // pred_check
          %p237 = pneg %p161
        $region30: #{tpu_custom_call.1} parent=11 // pred_check_branch
          %239 = sbr.rel (%p237) target = $region32
        $region31: #{tpu_custom_call.1} parent=11 // pred_region
          _
        $region32: #{tpu_custom_call.1} parent=11 // pred_fallthru
          _
        // Predicated region
        $region33: #{tpu_custom_call.1} parent=11 // pred_check
          %p240 = pneg %p182
        $region34: #{tpu_custom_call.1} parent=11 // pred_check_branch
          %242 = sbr.rel (%p240) target = $region36
        $region35: #{tpu_custom_call.1} parent=11 // pred_region
          _
        $region36: #{tpu_custom_call.1} parent=11 // pred_fallthru
          _
      $region12: #{tpu_custom_call.1} parent=5 // pred_fallthru
        _
      %p243 = scmp.lt.s32.totalorder %s16, 2
      // Predicated region
      $region37: #{tpu_custom_call.1} parent=5 // pred_check
        %p244 = pneg %p243
      $region38: #{tpu_custom_call.1} parent=5 // pred_check_branch
        %246 = sbr.rel (%p244) target = $region40
      $region39: #{tpu_custom_call.1} parent=5 // pred_region
        // Predicated region
        $region41: #{tpu_custom_call.1} parent=39 // pred_check
          %p247 = pneg %p50
        $region42: #{tpu_custom_call.1} parent=39 // pred_check_branch
          %249 = sbr.rel (%p247) target = $region44
        $region43: #{tpu_custom_call.1} parent=39 // pred_region
          %s250 = smul.u32 2, %s24
          %p251 = scmp.lt.s32.totalorder %s23, 1
          %s252 = scalar_select %p251, %s23, 1
          %p253 = scmp.lt.s32.totalorder %s250, 1
          %s254 = scalar_select %p253, %s250, 1
          %s255 = smul.addr %s252, 2
          %s256 = sadd.s32 %s254, %s255
          %s257 = smul.addr %s256, 4
          %s258 = scalar_lea.vmem %s0, %s257
          %s259 = smul.u32 2, %s24
        $region44: #{tpu_custom_call.1} parent=39 // pred_fallthru
          _
      $region40: #{tpu_custom_call.1} parent=5 // pred_fallthru
        _
      %p260 = scmp.le.s32.totalorder 1, %s16
      %p261 = scmp.lt.s32.totalorder %s16, 3
      %p262 = pnand %p260, %p261
      %p263 = pneg %p262
      // Predicated region
      $region45: #{tpu_custom_call.1} parent=5 // pred_check
        _
      $region46: #{tpu_custom_call.1} parent=5 // pred_check_branch
        %265 = sbr.rel (%p262) target = $region48
      $region47: #{tpu_custom_call.1} parent=5 // pred_region
        %s266 = ssub.s32 %s16, 1
        %s267 = smul.u32 2, %s26
        %p268 = scmp.lt.s32.totalorder %s25, 1
        %s269 = scalar_select %p268, %s25, 1
        %p270 = scmp.lt.s32.totalorder %s267, 1
        %s271 = scalar_select %p270, %s267, 1
        %s272 = smul.addr %s269, 2
        %s273 = sadd.s32 %s271, %s272
        %s274 = smul.addr %s273, 4
        %s275 = scalar_lea.vmem %s0, %s274
        %p276 = pneg %p56
        %p277 = pneg %p53
        %p278 = pneg %p77
        %p279 = pneg %p74
        %p280 = pneg %p98
        %p281 = pneg %p95
        %p282 = pneg %p119
        %p283 = pneg %p116
        %p284 = pneg %p140
        %p285 = pneg %p137
        %p286 = pneg %p161
        %p287 = pneg %p158
        %p288 = pneg %p182
        %p289 = pneg %p179
        %p290 = pneg %p210
        %p291 = pneg %p207
        %s292 = sand.u32 %s197, 1
        %s293 = scalar_lea.sflag [#allocation3], %s292
        %s294 = sand.u32 %s197, 1
        %s295 = smul.addr %s294, 8
        %s296 = scalar_lea.vmem [#allocation2], %s295
        %s297 = smul.u32 2, %s26
        %p298 = scmp.lt.s32.totalorder %s25, 1
        %s299 = scalar_select %p298, %s25, 1
        %p300 = scmp.lt.s32.totalorder %s297, 1
        %s301 = scalar_select %p300, %s297, 1
        %s302 = smul.addr %s299, 2
        %s303 = sadd.s32 %s301, %s302
        %s304 = smul.addr %s303, 4
        %s305 = scalar_lea.vmem %s0, %s304
        %s306 = smul.u32 2, %s26
        %s307 = smul.u32 2, %s26
        %v309 = vld [vmem:[%s305] sm:$0xff]
        %v310 = vld [vmem:[%s1] sm:$0xf]
        %v311 = vld [vmem:[%s1 + $0x4] sm:$0xf]
        %v312 = vld [vmem:[%s1 + $0x8] sm:$0xf]
        %314 = vst [vmem:[#allocation1] ss:$2 sm:$0xff] %v309
        %v315 = vld.sshfl [vmem:[#allocation1] sm:$0xff pattern:$0x75316420]
        %v316 = vld.sshfl [vmem:[#allocation1 + $0x8] sm:$0xff pattern:$0x75316420]
        %v319 = vpack.c.bf16 %v315, %v315
        %v320 = vpack.c.bf16 %v316, %v316
        %v321 = vld [vmem:[%s2] sm:$0xff]
        %v322 = vld [vmem:[%s2 + $0x8] sm:$0xff]
        %v323 = vld [vmem:[%s2 + $0x10] sm:$0xff]
        %325 = vset.pattern.permute.xlu0 0
        %326 = vperm.xlu0 %325, %v321
        %v327 = vpop.permute.xlu0 %326
        %330 = vset.pattern.permute.xlu0 0
        %331 = vperm.xlu0 %330, %v322
        %v332 = vpop.permute.xlu0 %331
        %335 = vset.pattern.permute.xlu0 0
        %336 = vperm.xlu0 %335, %v323
        %v337 = vpop.permute.xlu0 %336
        %v342 = vunpack.c.l.b16 %v310
        %v343 = vunpack.c.l.b16 %v311
        %v344 = vunpack.c.l.b16 %v312
        %v345 = vpack.c.b16 %v343, %v342
        %v346 = vpack.c.b16 %v344, %v344
        %vm347 = vcmask 31744
        %v349 = vsel %vm347, %v345, 0
        %v352 = vsel %vm347, %v346, 0
        %vm354 = vcmask 1041408
        %v356 = vsel %vm354, %v319, 0
        %v359 = vsel %vm354, %v320, 0
        %361 = vmatpush.bf16.msra.mxu0 0
        %362 = vmatpush.bf16.msra.mxu0 0
        %363 = vmatpush.bf16.msra.mxu0 0
        %364 = vmatpush.bf16.msra.mxu0 0
        %365 = vmatpush.bf16.msra.mxu0 0
        %366 = vmatpush.bf16.msra.mxu0 0
        %367 = vmatpush.bf16.msra.mxu0 0
        %368 = vmatpush.bf16.msra.mxu0 %v356
        %369 = vmatmul.bf16.gmra.mxu0 %v349
        %v370 = vpop.f32.mrf.mxu0
        %v371 = vadd.f32 %v327, %v370
        %v372 = vpop.f32.mrf.mxu0
        %v373 = vadd.f32 %v332, %v372
        %374 = vmatmul.bf16.gmra.mxu0 %v352
        %v375 = vpop.f32.mrf.mxu0
        %v376 = vadd.f32 %v337, %v375
        %v377 = vpop.f32.mrf.mxu0
        %378 = vdwg.mxu0
        %379 = vmatpush.bf16.msra.mxu0 0
        %380 = vmatpush.bf16.msra.mxu0 0
        %381 = vmatpush.bf16.msra.mxu0 0
        %382 = vmatpush.bf16.msra.mxu0 0
        %383 = vmatpush.bf16.msra.mxu0 0
        %384 = vmatpush.bf16.msra.mxu0 0
        %385 = vmatpush.bf16.msra.mxu0 0
        %386 = vmatpush.bf16.msra.mxu0 %v359
        %387 = vmatmul.bf16.gmra.mxu0 %v349
        %v388 = vpop.f32.mrf.mxu0
        %v389 = vadd.f32 %v327, %v388
        %v390 = vpop.f32.mrf.mxu0
        %v391 = vadd.f32 %v332, %v390
        %392 = vmatmul.bf16.gmra.mxu0 %v352
        %v393 = vpop.f32.mrf.mxu0
        %v394 = vadd.f32 %v337, %v393
        %v395 = vpop.f32.mrf.mxu0
        %396 = vdwg.mxu0
        %v397 = vmax.f32 %v371, 0.0
        %v398 = vmax.f32 %v389, 0.0
        %v399 = vmax.f32 %v373, 0.0
        %v400 = vmax.f32 %v391, 0.0
        %v401 = vmax.f32 %v376, 0.0
        %v402 = vmax.f32 %v394, 0.0
        %v403 = vmin.f32 %v397, 6.0
        %v404 = vmin.f32 %v398, 6.0
        %v405 = vmin.f32 %v399, 6.0
        %v406 = vmin.f32 %v400, 6.0
        %v407 = vmin.f32 %v401, 6.0
        %v408 = vmin.f32 %v402, 6.0
        %v409 = vld [vmem:[%s3] sm:$0xff]
        %v410 = vld [vmem:[%s3 + $0x8] sm:$0xff]
        %v411 = vld [vmem:[%s3 + $0x10] sm:$0xff]
        %413 = vset.pattern.permute.xlu0 0
        %414 = vperm.xlu0 %413, %v409
        %v415 = vpop.permute.xlu0 %414
        %418 = vset.pattern.permute.xlu0 0
        %419 = vperm.xlu0 %418, %v410
        %v420 = vpop.permute.xlu0 %419
        %423 = vset.pattern.permute.xlu0 0
        %424 = vperm.xlu0 %423, %v411
        %v425 = vpop.permute.xlu0 %424
        %v427 = vmul.f32 %v403, %v415
        %v428 = vmul.f32 %v404, %v415
        %v429 = vmul.f32 %v405, %v420
        %v430 = vmul.f32 %v406, %v420
        %v431 = vmul.f32 %v407, %v425
        %v432 = vmul.f32 %v408, %v425
        %v433 = vld [vmem:[%s4] sm:$0xff]
        %v434 = vld [vmem:[%s4 + $0x8] sm:$0xff]
        %v435 = vld [vmem:[%s4 + $0x10] sm:$0xff]
        %437 = vset.pattern.permute.xlu0 0
        %438 = vperm.xlu0 %437, %v433
        %v439 = vpop.permute.xlu0 %438
        %442 = vset.pattern.permute.xlu0 0
        %443 = vperm.xlu0 %442, %v434
        %v444 = vpop.permute.xlu0 %443
        %447 = vset.pattern.permute.xlu0 0
        %448 = vperm.xlu0 %447, %v435
        %v449 = vpop.permute.xlu0 %448
        %v451 = vadd.f32 %v427, %v439
        %v452 = vadd.f32 %v428, %v439
        %v453 = vadd.f32 %v429, %v444
        %v454 = vadd.f32 %v430, %v444
        %v455 = vadd.f32 %v431, %v449
        %v456 = vadd.f32 %v432, %v449
        %v457 = vmax.f32 %v451, 0.0
        %v458 = vmax.f32 %v452, 0.0
        %v459 = vmax.f32 %v453, 0.0
        %v460 = vmax.f32 %v454, 0.0
        %v461 = vmax.f32 %v455, 0.0
        %v462 = vmax.f32 %v456, 0.0
        %v463 = vmin.f32 %v457, 6.0
        %v464 = vmin.f32 %v458, 6.0
        %v465 = vmin.f32 %v459, 6.0
        %v466 = vmin.f32 %v460, 6.0
        %v467 = vmin.f32 %v461, 6.0
        %v468 = vmin.f32 %v462, 6.0
        %v469 = vld [vmem:[%s5] sm:$0x3]
        %v470 = vpack.c.bf16 %v465, %v463
        %v471 = vpack.c.bf16 %v466, %v464
        %v472 = vpack.c.bf16 %v467, %v467
        %v473 = vpack.c.bf16 %v468, %v468
        %v474 = vld [vmem:[%s6] sm:$0xf]
        %476 = vset.pattern.permute.xlu0 0
        %477 = vperm.xlu0 %476, %v474
        %v478 = vpop.permute.xlu0 %477
        %vm480 = vcmask 195584
        %v482 = vsel %vm480, %v469, 0
        %vm484 = vcmask 1043456
        %v486 = vsel %vm484, %v472, 0
        %v489 = vsel %vm484, %v473, 0
        %491 = vmatpush.bf16.msra.mxu0 0
        %492 = vmatpush.bf16.msra.mxu0 0
        %493 = vmatpush.bf16.msra.mxu0 0
        %494 = vmatpush.bf16.msra.mxu0 0
        %495 = vmatpush.bf16.msra.mxu0 0
        %496 = vmatpush.bf16.msra.mxu0 0
        %497 = vmatpush.bf16.msra.mxu0 %v486
        %498 = vmatpush.bf16.msra.mxu0 %v470
        %499 = vmatmul.bf16.gmra.mxu0 %v482
        %v500 = vpop.f32.mrf.mxu0
        %v501 = vadd.f32 %v478, %v500
        %v502 = vpop.f32.mrf.mxu0
        %503 = vdwg.mxu0
        %504 = vmatpush.bf16.msra.mxu0 0
        %505 = vmatpush.bf16.msra.mxu0 0
        %506 = vmatpush.bf16.msra.mxu0 0
        %507 = vmatpush.bf16.msra.mxu0 0
        %508 = vmatpush.bf16.msra.mxu0 0
        %509 = vmatpush.bf16.msra.mxu0 0
        %510 = vmatpush.bf16.msra.mxu0 %v489
        %511 = vmatpush.bf16.msra.mxu0 %v471
        %512 = vmatmul.bf16.gmra.mxu0 %v482
        %v513 = vpop.f32.mrf.mxu0
        %v514 = vadd.f32 %v478, %v513
        %v515 = vpop.f32.mrf.mxu0
        %516 = vdwg.mxu0
        %517 = vst [vmem:[#allocation1] ss:$2 sm:$0xff] %v309
        %v518 = vld.sshfl [vmem:[#allocation1] sm:$0xff pattern:$0x75316420]
        %v519 = vld.sshfl [vmem:[#allocation1 + $0x8] sm:$0xff pattern:$0x75316420]
        %v522 = vadd.f32 %v501, %v518
        %v523 = vadd.f32 %v514, %v519
        %v526 = vrot.slane %v523, 4
        %v527 = vsel %vm484, %v522, %v526
        %529 = vst [vmem:[%s296] sm:$0xff] %v527
        %s530 = sand.u32 %s197, 1
        %s531 = scalar_lea.sflag [#allocation3], %s530
        %s532 = sand.u32 %s197, 1
        %s533 = smul.addr %s532, 8
        %s534 = scalar_lea.vmem [#allocation2], %s533
        // Predicated region
        $region49: #{tpu_custom_call.1} parent=47 // pred_check
          %p535 = pneg %p207
        $region50: #{tpu_custom_call.1} parent=47 // pred_check_branch
          %537 = sbr.rel (%p535) target = $region52
        $region51: #{tpu_custom_call.1} parent=47 // pred_region
          %s538 = smul.u32 2, %s26
          %540 = vsyncadd %s531, 0
          %s541 = smul.addr %s25, 2
          %s542 = sadd.s32 %s538, %s541
          %s543 = smul.addr %s542, 4
          %s544 = scalar_lea.hbm %s7, %s543
          %s546 = sshll.u32 %s534, 4
          %s547 = int_to_ptr.vmem [resolvable:$true] %s546
          %s548 = sshll.u32 %s544, 4
          %s549 = int_to_ptr.hbm [resolvable:$true] %s548
          %551 = dma.vmem_to_hbm [thread:$0]  %s547, 128, %s549, %s531
        $region52: #{tpu_custom_call.1} parent=47 // pred_fallthru
          _
      $region48: #{tpu_custom_call.1} parent=5 // pred_fallthru
        _
      %p552 = scmp.le.s32.totalorder 2, %s16
      // Predicated region
      $region53: #{tpu_custom_call.1} parent=5 // pred_check
        %p553 = pneg %p552
      $region54: #{tpu_custom_call.1} parent=5 // pred_check_branch
        %555 = sbr.rel (%p553) target = $region56
      $region55: #{tpu_custom_call.1} parent=5 // pred_region
        %s556 = ssub.s32 %s16, 2
        // Predicated region
        $region57: #{tpu_custom_call.1} parent=55 // pred_check
          %p557 = pneg %p213
        $region58: #{tpu_custom_call.1} parent=55 // pred_check_branch
          %559 = sbr.rel (%p557) target = $region60
        $region59: #{tpu_custom_call.1} parent=55 // pred_region
          %s560 = sand.u32 %s198, 1
          %s561 = scalar_lea.sflag [#allocation3], %s560
          %s562 = sand.u32 %s198, 1
          %s563 = smul.addr %s562, 8
          %s564 = scalar_lea.vmem [#allocation2], %s563
          %566 = dma.done %s561, 128
        $region60: #{tpu_custom_call.1} parent=55 // pred_fallthru
          _
      $region56: #{tpu_custom_call.1} parent=5 // pred_fallthru
        _
    $region6: #{tpu_custom_call.1} parent=1 // loop_footer
      %s20 = sadd.s32 1, %s16
    $region7: #{tpu_custom_call.1} parent=1 // loop_footer_branch
      %15 = sbr.rel target = $region3
    $region8: #{tpu_custom_call.1} parent=1 // loop_exit
      _
    %567 = vsyncpa [#allocation3], 1
    %s568 = scalar_lea.sflag [#allocation3], 1
    %569 = vsyncpa %s568, 1

</llo_original>
